<compile_context>
chip_gen: v7x
topology: tpu7x:2x2x1
jax: 0.10.0
libtpu: 0.0.40
codegen_flags: <defaults>
</compile_context>

<pallas_src>
import jax
import jax.numpy as jnp
from jax.experimental import pallas as pl
from jax.experimental.pallas import tpu as pltpu


ND = 10            # number of discrete codes (nd in the PyTorch module)
IN_FEATURES = 128  # input feature size of the Linear layer
PAD_ND = 128       # class axis padded to one full 128-lane vreg
MAX_TB = 1024      # batch-tile rows for large batches (0.5 MiB f32 in / tile)
NEG_BIG = -1e30    # bias sentinel for pad classes -> exp() underflows to 0


def _round_up(x, m):
    return ((x + m - 1) // m) * m


def _netd_q_kernel(x_ref, w_ref, b_ref, o_ref):
    # x_ref: (TB, 128) f32 | w_ref: (128, 128) bf16 (zero-padded cols)
    # b_ref: (1, 128) f32 (pad cols = -1e30)      | o_ref: (TB, 128) f32
    x_bf = x_ref[...].astype(jnp.bfloat16)            # VPU cast, native MXU dtype
    logits = jnp.dot(x_bf, w_ref[...],
                     preferred_element_type=jnp.float32) + b_ref[...]
    # numerically stable LogSoftmax over the (padded) class axis
    m = jnp.max(logits, axis=-1, keepdims=True)       # XLU reduce
    shifted = logits - m
    lse = jnp.log(jnp.sum(jnp.exp(shifted), axis=-1, keepdims=True))
    o_ref[...] = shifted - lse


def netd_q_forward(x, weight, bias):
    """x: (B, 128, 1, 1) NCHW.  weight: (128, nd) [= W^T vs torch].  bias: (nd,)."""
    b = x.shape[0]
    nd = weight.shape[1]
    x2d = x.reshape(b, IN_FEATURES).astype(jnp.float32)

    # --- pad class axis to 128 lanes (lane-dense stores, full MXU result) ---
    w_pad = jnp.zeros((IN_FEATURES, PAD_ND), jnp.bfloat16)
    w_pad = w_pad.at[:, :nd].set(weight.astype(jnp.bfloat16))
    bias_pad = jnp.full((1, PAD_ND), NEG_BIG, jnp.float32)
    bias_pad = bias_pad.at[0, :nd].set(bias.astype(jnp.float32))

    # --- choose a batch tile; pad batch rows only if strictly necessary ---
    tb = MAX_TB if b > MAX_TB else _round_up(b, 8)     # f32 sublane granularity
    rows = _round_up(b, tb)
    if rows != b:
        x2d = jnp.pad(x2d, ((0, rows - b), (0, 0)))    # pad rows give finite junk, sliced off

    cost = pl.CostEstimate(
        flops=2 * rows * IN_FEATURES * PAD_ND,
        transcendentals=rows * PAD_ND,
        bytes_accessed=(rows * IN_FEATURES * 4        # x   (f32)
                        + IN_FEATURES * PAD_ND * 2    # W   (bf16, resident)
                        + PAD_ND * 4                  # bias (f32, resident)
                        + rows * PAD_ND * 4))         # out (f32)

    out = pl.pallas_call(
        _netd_q_kernel,
        out_shape=jax.ShapeDtypeStruct((rows, PAD_ND), jnp.float32),
        grid_spec=pl.GridSpec(
            grid=(rows // tb,),
            in_specs=[
                pl.BlockSpec((tb, IN_FEATURES), lambda i: (i, 0)),       # x tile
                pl.BlockSpec((IN_FEATURES, PAD_ND), lambda i: (0, 0)),   # W resident
                pl.BlockSpec((1, PAD_ND), lambda i: (0, 0)),             # bias resident
            ],
            out_specs=pl.BlockSpec((tb, PAD_ND), lambda i: (i, 0)),
        ),
        compiler_params=pltpu.CompilerParams(
            dimension_semantics=("parallel",)),       # shards batch tiles on v7x
        cost_estimate=cost,
    )(x2d, w_pad, bias_pad)

    # slice back to real batch / real classes; match torch: x.view(-1, nd, 1, 1)
    return out[:b, :nd].reshape(b, nd, 1, 1)


def init_params(key, nd=ND):
    """Deterministic init mimicking nn.Linear(128, nd) shapes."""
    kw, kb = jax.random.split(key)
    bound = 1.0 / jnp.sqrt(IN_FEATURES)
    # Stored as (in_features, out_features) = W^T relative to torch's (nd, 128).
    weight = jax.random.uniform(kw, (IN_FEATURES, nd), jnp.float32, -bound, bound)
    bias = jax.random.uniform(kb, (nd,), jnp.float32, -bound, bound)
    return weight, bias


if __name__ == "__main__":
    key = jax.random.PRNGKey(0)
    k_x, k_p = jax.random.split(key)

    B = 8
    x = jax.random.normal(k_x, (B, IN_FEATURES, 1, 1), jnp.float32)  # NCHW
    weight, bias = init_params(k_p)

    y = netd_q_forward(x, weight, bias)
    y = jax.block_until_ready(y)

    # sanity: shape (B, nd, 1, 1), each row a valid log-prob vector
    assert y.shape == (B, ND, 1, 1)
    y2d = y.reshape(B, ND)
    row_sums = jnp.sum(jnp.exp(y2d), axis=-1)
    assert bool(jnp.all(jnp.abs(row_sums - 1.0) < 1e-3))

    # matches an f32 reference within bf16-matmul tolerance
    ref_logits = x.reshape(B, IN_FEATURES) @ weight + bias
    ref = jax.nn.log_softmax(ref_logits, axis=-1)
    assert bool(jnp.max(jnp.abs(y2d - ref)) < 5e-2)

    print("KERNEL_OK")
</pallas_src>

<mosaic_0001>
module attributes {stable_mosaic.version = 11 : i64} {
  func.func @_netd_q_kernel(%arg0: i32, %arg1: memref<8x128xf32, #tpu.memory_space<vmem>>, %arg2: memref<128x128xbf16, #tpu.memory_space<vmem>>, %arg3: memref<1x128xf32, #tpu.memory_space<vmem>>, %arg4: memref<8x128xf32, #tpu.memory_space<vmem>>) attributes {dimension_semantics = [#tpu.dimension_semantics<parallel>], iteration_bounds = array<i64: 1>, scalar_prefetch = 0 : i64, scratch_operands = 0 : i64, tpu.core_type = #tpu.core_type<tc>, window_params = [{transform_indices = @transform_0, window_bounds = array<i64: 8, 128>}, {pipeline_mode = #tpu.pipeline_mode<synchronous>, transform_indices = @transform_1, window_bounds = array<i64: 128, 128>}, {pipeline_mode = #tpu.pipeline_mode<synchronous>, transform_indices = @transform_2, window_bounds = array<i64: 1, 128>}, {transform_indices = @transform_3, window_bounds = array<i64: 8, 128>}]} {
    %c0 = arith.constant 0 : index
    %c0_0 = arith.constant 0 : index
    %0 = vector.load %arg1[%c0, %c0_0] : memref<8x128xf32, #tpu.memory_space<vmem>>, vector<8x128xf32>
    %1 = arith.truncf %0 : vector<8x128xf32> to vector<8x128xbf16>
    %c0_1 = arith.constant 0 : index
    %c0_2 = arith.constant 0 : index
    %2 = vector.load %arg2[%c0_1, %c0_2] : memref<128x128xbf16, #tpu.memory_space<vmem>>, vector<128x128xbf16>
    %cst = arith.constant dense<0.000000e+00> : vector<8x128xf32>
    %3 = tpu.matmul %1, %2, %cst {dimension_numbers = #tpu.dot_dimension_numbers<[1], [0], [0], [1], [0, 0, 1, 1], [], []>} : vector<8x128xbf16>, vector<128x128xbf16>, vector<8x128xf32> -> vector<8x128xf32>
    %c0_3 = arith.constant 0 : index
    %c0_4 = arith.constant 0 : index
    %4 = vector.load %arg3[%c0_3, %c0_4] : memref<1x128xf32, #tpu.memory_space<vmem>>, vector<1x128xf32>
    %5 = vector.broadcast %4 : vector<1x128xf32> to vector<8x128xf32>
    %6 = arith.addf %3, %5 : vector<8x128xf32>
    %cst_5 = arith.constant dense<0xFF800000> : vector<8xf32>
    %7 = vector.multi_reduction <maximumf>, %6, %cst_5 [1] : vector<8x128xf32> to vector<8xf32>
    %8 = vector.shape_cast %7 : vector<8xf32> to vector<8x1xf32>
    %9 = vector.broadcast %8 : vector<8x1xf32> to vector<8x128xf32>
    %10 = arith.subf %6, %9 : vector<8x128xf32>
    %11 = math.exp %10 : vector<8x128xf32>
    %cst_6 = arith.constant dense<0.000000e+00> : vector<8xf32>
    %12 = vector.multi_reduction <add>, %11, %cst_6 [1] : vector<8x128xf32> to vector<8xf32>
    %13 = vector.shape_cast %12 : vector<8xf32> to vector<8x1xf32>
    %14 = math.log %13 : vector<8x1xf32>
    %15 = vector.broadcast %14 : vector<8x1xf32> to vector<8x128xf32>
    %16 = arith.subf %10, %15 : vector<8x128xf32>
    %c0_7 = arith.constant 0 : index
    %c0_8 = arith.constant 0 : index
    %17 = vector.load %arg4[%c0_7, %c0_8] : memref<8x128xf32, #tpu.memory_space<vmem>>, vector<8x128xf32>
    tpu.vector_store %arg4[%c0_7, %c0_8], %16 {strides = array<i32>} : memref<8x128xf32, #tpu.memory_space<vmem>>, vector<8x128xf32>,
    return
  }
  func.func @transform_0(%arg0: i32) -> (i32, i32) {
    %c0_i32 = arith.constant 0 : i32
    %c0_i32_0 = arith.constant 0 : i32
    return %arg0, %c0_i32 : i32, i32
  }
  func.func @transform_1(%arg0: i32) -> (i32, i32) {
    %c0_i32 = arith.constant 0 : i32
    %c0_i32_0 = arith.constant 0 : i32
    %c0_i32_1 = arith.constant 0 : i32
    return %c0_i32, %c0_i32_0 : i32, i32
  }
  func.func @transform_2(%arg0: i32) -> (i32, i32) {
    %c0_i32 = arith.constant 0 : i32
    %c0_i32_0 = arith.constant 0 : i32
    %c0_i32_1 = arith.constant 0 : i32
    return %c0_i32, %c0_i32_0 : i32, i32
  }
  func.func @transform_3(%arg0: i32) -> (i32, i32) {
    %c0_i32 = arith.constant 0 : i32
    %c0_i32_0 = arith.constant 0 : i32
    return %arg0, %c0_i32 : i32, i32
  }
}

</mosaic_0001>

<llo_original>
// kernel: tpu_custom_call.1
$region0: #{tpu_custom_call.1}
  #allocation0 [shape = 'u32[]', space=smem, size = 0x4, offset = 0x4, fixed_abs, tag = 'smem constant byte address 0x4 - core index']
  #allocation1 [shape = 'u32[144,128]{1,0:T(1,128)}', space=vmem, size = 0x12000, scoped, tag = 'internal scratch']
  %s0 = inlined_call_operand.hbm [shape: f32[8,128], index: 0, kind: input, shape index: {}]
  %s1 = inlined_call_operand.hbm [shape: bf16[128,128], index: 1, kind: input, shape index: {}]
  %s2 = inlined_call_operand.vmem [shape: f32[1,128], index: 2, kind: input, shape index: {}]
  %s3 = inlined_call_operand.hbm [shape: f32[8,128], index: 3, kind: output, shape index: {}]
  %s4 = sld [smem:[#allocation0]]
  $region30: #{tpu_custom_call.1} parent=0
    _
  %s6 = ssub.s32 1, %s4
  %s7 = scalar_select 0, %s6, %s4
  $region1: #{tpu_custom_call.1} parent=0
    #allocation2 [shape = 'u8[4096]{0}', space=vmem, size = 0x1000, scoped, tag = 'input window, operand 0, single buffered']
    #allocation3 [shape = 's32[1]{0}', space=sflag, size = 0x4, scoped, tag = 'scoped memory for tpu_custom_call.1']
    #allocation4 [shape = 's32[1]{0}', space=sflag, size = 0x4, scoped, tag = 'scoped memory for tpu_custom_call.1']
    #allocation5 [shape = 'u8[32768]{0}', space=vmem, size = 0x8000, scoped, tag = 'input window, operand 1, single buffered']
    #allocation6 [shape = 's32[1]{0}', space=sflag, size = 0x4, scoped, tag = 'scoped memory for tpu_custom_call.1']
    #allocation7 [shape = 'u8[4096]{0}', space=vmem, size = 0x1000, scoped, tag = 'output window, operand 0, single buffered']
    %8 = vsyncpa [#allocation3], 0
    %9 = vsyncpa [#allocation6], 0
    %10 = vsyncpa [#allocation4], 0
    // Predicated region
    $region2: #{tpu_custom_call.1} parent=1 // pred_check
      _
    $region3: #{tpu_custom_call.1} parent=1 // pred_check_branch
      %12 = sbr.rel (0) target = $region5
    $region4: #{tpu_custom_call.1} parent=1 // pred_region
      %s14 = ssub.s32 128, 128
      %15 = vsyncadd [#allocation3], %s14
      %s17 = sshll.u32 [#allocation2], 4
      %s18 = int_to_ptr.vmem [resolvable:$true] %s17
      %20 = dma.hbm_to_vmem [thread:$0]  %s0, 128, %s18, [#allocation3]
    $region5: #{tpu_custom_call.1} parent=1 // pred_fallthru
      _
    // Predicated region
    $region6: #{tpu_custom_call.1} parent=1 // pred_check
      _
    $region7: #{tpu_custom_call.1} parent=1 // pred_check_branch
      %22 = sbr.rel (0) target = $region9
    $region8: #{tpu_custom_call.1} parent=1 // pred_region
      %s24 = ssub.s32 1024, 1024
      %25 = vsyncadd [#allocation6], %s24
      %s26 = sshll.u32 [#allocation5], 4
      %s27 = int_to_ptr.vmem [resolvable:$true] %s26
      %32 = dma.hbm_to_vmem [thread:$0]  %s1, 1024, %s27, [#allocation6], 64, 64, 4
    $region9: #{tpu_custom_call.1} parent=1 // pred_fallthru
      _
    // Predicated region
    $region10: #{tpu_custom_call.1} parent=1 // pred_check
      _
    $region11: #{tpu_custom_call.1} parent=1 // pred_check_branch
      %34 = sbr.rel (0) target = $region13
    $region12: #{tpu_custom_call.1} parent=1 // pred_region
      _
    $region13: #{tpu_custom_call.1} parent=1 // pred_fallthru
      _
    // Predicated region
    $region14: #{tpu_custom_call.1} parent=1 // pred_check
      _
    $region15: #{tpu_custom_call.1} parent=1 // pred_check_branch
      %36 = sbr.rel (0) target = $region17
    $region16: #{tpu_custom_call.1} parent=1 // pred_region
      %37 = dma.done [#allocation3], 128
    $region17: #{tpu_custom_call.1} parent=1 // pred_fallthru
      _
    // Predicated region
    $region18: #{tpu_custom_call.1} parent=1 // pred_check
      _
    $region19: #{tpu_custom_call.1} parent=1 // pred_check_branch
      %39 = sbr.rel (0) target = $region21
    $region20: #{tpu_custom_call.1} parent=1 // pred_region
      %40 = dma.done [#allocation6], 1024
    $region21: #{tpu_custom_call.1} parent=1 // pred_fallthru
      _
    %v42 = vld [vmem:[#allocation2] sm:$0xff]
    %v43 = vpack.c.bf16 %v42, %v42
    %v44 = vld [vmem:[#allocation5] sm:$0xf]
    %v45 = vld [vmem:[#allocation5 + $0x4] sm:$0xf]
    %v46 = vld [vmem:[#allocation5 + $0x8] sm:$0xf]
    %v47 = vld [vmem:[#allocation5 + $0xc] sm:$0xf]
    %v48 = vld [vmem:[#allocation5 + $0x10] sm:$0xf]
    %v49 = vld [vmem:[#allocation5 + $0x14] sm:$0xf]
    %v50 = vld [vmem:[#allocation5 + $0x18] sm:$0xf]
    %v51 = vld [vmem:[#allocation5 + $0x1c] sm:$0xf]
    %v52 = vld [vmem:[#allocation5 + $0x20] sm:$0xf]
    %v53 = vld [vmem:[#allocation5 + $0x24] sm:$0xf]
    %v54 = vld [vmem:[#allocation5 + $0x28] sm:$0xf]
    %v55 = vld [vmem:[#allocation5 + $0x2c] sm:$0xf]
    %v56 = vld [vmem:[#allocation5 + $0x30] sm:$0xf]
    %v57 = vld [vmem:[#allocation5 + $0x34] sm:$0xf]
    %v58 = vld [vmem:[#allocation5 + $0x38] sm:$0xf]
    %v59 = vld [vmem:[#allocation5 + $0x3c] sm:$0xf]
    %v60 = vld [vmem:[%s2] sm:$0x1]
    %v62 = vlaneseq
    %v63 = vshrl.u32 %v62, 7
    %v64 = vsub.s32 0, %v63
    %v65 = vrot.slane %v60, %v64
    %v83 = vunpack.c.l.b16 %v44
    %v84 = vunpack.c.l.b16 %v45
    %v85 = vunpack.c.l.b16 %v46
    %v86 = vunpack.c.l.b16 %v47
    %v87 = vunpack.c.l.b16 %v48
    %v88 = vunpack.c.l.b16 %v49
    %v89 = vunpack.c.l.b16 %v50
    %v90 = vunpack.c.l.b16 %v51
    %v91 = vunpack.c.l.b16 %v52
    %v92 = vunpack.c.l.b16 %v53
    %v93 = vunpack.c.l.b16 %v54
    %v94 = vunpack.c.l.b16 %v55
    %v95 = vunpack.c.l.b16 %v56
    %v96 = vunpack.c.l.b16 %v57
    %v97 = vunpack.c.l.b16 %v58
    %v98 = vunpack.c.l.b16 %v59
    %v99 = vpack.c.b16 %v84, %v83
    %v100 = vpack.c.b16 %v86, %v85
    %v101 = vpack.c.b16 %v88, %v87
    %v102 = vpack.c.b16 %v90, %v89
    %v103 = vpack.c.b16 %v92, %v91
    %v104 = vpack.c.b16 %v94, %v93
    %v105 = vpack.c.b16 %v96, %v95
    %v106 = vpack.c.b16 %v98, %v97
    %115 = vmatprep.subr.bf16.mxu0 0
    %116 = vmatpush1.bf16.msra.mxu0 %v99
    %117 = vmatprep.subr.bf16.mxu0 0
    %118 = vmatpush1.bf16.msra.mxu0 %v100
    %119 = vmatprep.subr.bf16.mxu0 0
    %120 = vmatpush1.bf16.msra.mxu0 %v101
    %121 = vmatprep.subr.bf16.mxu0 0
    %122 = vmatpush1.bf16.msra.mxu0 %v102
    %123 = vmatprep.subr.bf16.mxu0 0
    %124 = vmatpush1.bf16.msra.mxu0 %v103
    %125 = vmatprep.subr.bf16.mxu0 0
    %126 = vmatpush1.bf16.msra.mxu0 %v104
    %127 = vmatprep.subr.bf16.mxu0 0
    %128 = vmatpush1.bf16.msra.mxu0 %v105
    %129 = vmatprep.subr.bf16.mxu0 0
    %130 = vmatpush1.bf16.msra.mxu0 %v106
    %131 = vmatprep.subr.bf16.mxu0 0
    %132 = vmatpush1.bf16.msra.mxu0 0
    %133 = vmatprep.subr.bf16.mxu0 0
    %134 = vmatpush1.bf16.msra.mxu0 0
    %135 = vmatprep.subr.bf16.mxu0 0
    %136 = vmatpush1.bf16.msra.mxu0 0
    %137 = vmatprep.subr.bf16.mxu0 0
    %138 = vmatpush1.bf16.msra.mxu0 0
    %139 = vmatprep.subr.bf16.mxu0 0
    %140 = vmatpush1.bf16.msra.mxu0 0
    %141 = vmatprep.subr.bf16.mxu0 0
    %142 = vmatpush1.bf16.msra.mxu0 0
    %143 = vmatprep.subr.bf16.mxu0 0
    %144 = vmatpush1.bf16.msra.mxu0 0
    %145 = vmatprep.subr.bf16.mxu0 0
    %146 = vmatpush1.bf16.msra.mxu0 0
    %147 = vmatprep.mubr.bf16.mxu0 0
    %148 = vmatmul.mubr.bf16.gmra.mrb[0].mxu0 %v43
    %v149 = vpop.f32.mrb[0].mxu0
    %v150 = vadd.f32 %v65, %v149
    %v151 = vpop.f32.mrb[0].mxu0
    %v152 = vpop.f32.mrb[0].mxu0
    %v153 = vpop.f32.mrb[0].mxu0
    %154 = vdwg.mxu0
    %155 = vmax.xlane.f32.xlu0 %v150
    %v156 = vpop.xlane.xlu0 %155
    %v157 = vsub.f32 %v150, %v156
    %v158 = vmul.f32 %v157, 1.442695
    %v159 = vpow.pop %v158
    %160 = vadd.xlane.f32.xlu0 %v159
    %v161 = vpop.xlane.xlu0 %160
    %v162 = vlog2.pop %v161
    %v163 = vmul.f32 %v162, 0.6931472
    %v164 = vsub.f32 %v157, %v163
    %165 = vst [vmem:[#allocation7] sm:$0xff] %v164
    // Predicated region
    $region22: #{tpu_custom_call.1} parent=1 // pred_check
      _
    $region23: #{tpu_custom_call.1} parent=1 // pred_check_branch
      %167 = sbr.rel (0) target = $region25
    $region24: #{tpu_custom_call.1} parent=1 // pred_region
      %s169 = ssub.s32 128, 128
      %170 = vsyncadd [#allocation4], %s169
      %s172 = sshll.u32 [#allocation7], 4
      %s173 = int_to_ptr.vmem [resolvable:$true] %s172
      %175 = dma.vmem_to_hbm [thread:$0]  %s173, 128, %s3, [#allocation4]
    $region25: #{tpu_custom_call.1} parent=1 // pred_fallthru
      _
    // Predicated region
    $region26: #{tpu_custom_call.1} parent=1 // pred_check
      _
    $region27: #{tpu_custom_call.1} parent=1 // pred_check_branch
      %177 = sbr.rel (0) target = $region29
    $region28: #{tpu_custom_call.1} parent=1 // pred_region
      %178 = dma.done [#allocation4], 128
    $region29: #{tpu_custom_call.1} parent=1 // pred_fallthru
      _
    %179 = vsyncpa [#allocation3], 1
    %180 = vsyncpa [#allocation6], 1
    %181 = vsyncpa [#allocation4], 1

</llo_original>
